<compile_context>
chip_gen: v7x
topology: tpu7x:2x2x1
jax: 0.10.0
libtpu: 0.0.40
codegen_flags: <defaults>
</compile_context>

<pallas_src>
import jax
import jax.numpy as jnp
from jax.experimental import pallas as pl
from jax.experimental.pallas import tpu as pltpu

_LANE = 128
_SUBLANE = 8
_MIN_STEPS = 4  # minimum grid steps when the slab is larger than one block


def _normalization_kernel(mean_ref, inv_std_ref, x_ref, o_ref):
    # mean_ref / inv_std_ref : f32 param blocks, broadcast against the tile
    #   row layout:      (block_rows, 1)  -> broadcast along lanes
    #   fallback layout: (1, block_cols)  -> broadcast along sublanes
    # x_ref / o_ref : (block_rows, block_cols) tiles in the image dtype
    x = x_ref[...].astype(jnp.float32)
    o_ref[...] = ((x - mean_ref[...]) * inv_std_ref[...]).astype(o_ref.dtype)


def _round_down(x, m):
    return max(m, (x // m) * m)


def _target_block_bytes():
    # v7x: 3.2 TB/s HBM -> bigger blocks amortize the ~0.35us/step cost; 4 MiB
    # blocks => ~16 MiB resident, inside the 32 MiB default scoped VMEM.
    # v5e/v6e: 2 MiB blocks => ~8 MiB resident, inside v5e's 16 MiB default.
    try:
        kind = jax.devices()[0].device_kind.lower()
    except Exception:  # pragma: no cover - defensive, device query should not fail
        kind = ""
    if "v7" in kind:
        return 4 << 20
    return 2 << 20


def _choose_block(rows, cols, itemsize, target_bytes):
    """Pick (block_rows, block_cols) for a (rows, cols) slab.

    Guarantees:
      * block_rows * block_cols * itemsize <= target_bytes
      * block dims are (multiple-of-8, multiple-of-128) or equal the full dims
      * >= _MIN_STEPS grid steps whenever the slab needs more than one block
    """
    base_rows = rows if rows <= _SUBLANE else _round_down(rows, _SUBLANE)

    # Column block sized against the *whole-block* budget (assume at least
    # min(base_rows, 8) rows per block).
    rows_for_budget = min(base_rows, _SUBLANE)
    col_budget = max(_LANE, target_bytes // (itemsize * rows_for_budget))
    if cols <= _LANE:
        block_cols = cols
    else:
        block_cols = _round_down(min(cols, col_budget), _LANE)

    # Row block under the same whole-block budget.
    if rows <= _SUBLANE:
        block_rows = rows
    else:
        fit = max(_SUBLANE, target_bytes // (block_cols * itemsize))
        block_rows = _round_down(min(base_rows, fit), _SUBLANE)

    # Post-pass: keep the pipeline alive (>= _MIN_STEPS steps) when the slab
    # spans multiple blocks.  Shrink columns first (keeps lane density), then rows.
    def n_steps(br, bc):
        return pl.cdiv(rows, br) * pl.cdiv(cols, bc)

    if n_steps(block_rows, block_cols) > 1:
        while n_steps(block_rows, block_cols) < _MIN_STEPS and block_cols > _LANE:
            block_cols = _round_down(block_cols // 2, _LANE)
        while n_steps(block_rows, block_cols) < _MIN_STEPS and block_rows > _SUBLANE:
            block_rows = _round_down(block_rows // 2, _SUBLANE)

    assert block_rows * block_cols * itemsize <= max(
        target_bytes, rows * cols * itemsize if n_steps(block_rows, block_cols) == 1 else 0
    ), "block exceeds VMEM budget"
    return block_rows, block_cols


def normalization_forward(img, mean, std):
    """img: (N, C, H, W); mean/std: (C,). Returns (img - mean[:,None,None]) / std[:,None,None]."""
    N, C, H, W = img.shape
    L = H * W
    itemsize = jnp.dtype(img.dtype).itemsize
    target = _target_block_bytes()

    # Params always in float32 (reciprocal + arithmetic in f32, cast on store).
    mean_f32 = jnp.asarray(mean, dtype=jnp.float32)
    inv_std_f32 = 1.0 / jnp.asarray(std, dtype=jnp.float32)

    if L >= _LANE:
        # Lane-dense per-channel-row layout: (N*C, H*W), params as (R, 1) columns.
        R, Lc = N * C, L
        x2d = img.reshape(R, Lc)
        mean_arr = jnp.broadcast_to(mean_f32, (N, C)).reshape(R, 1)
        istd_arr = jnp.broadcast_to(inv_std_f32, (N, C)).reshape(R, 1)

        def param_block(br, bc):
            return (br, 1)

        def param_map(i, j):
            return (i, 0)
    else:
        # Tiny-spatial fallback: (N, C*H*W) rows with lane-aligned per-lane params,
        # so the output stays as lane-dense as the problem allows.
        R, Lc = N, C * L
        x2d = img.reshape(R, Lc)
        mean_arr = jnp.repeat(mean_f32, L).reshape(1, Lc)
        istd_arr = jnp.repeat(inv_std_f32, L).reshape(1, Lc)

        def param_block(br, bc):
            return (1, bc)

        def param_map(i, j):
            return (0, j)

    block_rows, block_cols = _choose_block(R, Lc, itemsize, target)
    grid = (pl.cdiv(R, block_rows), pl.cdiv(Lc, block_cols))  # rows outer, cols inner

    out2d = pl.pallas_call(
        _normalization_kernel,
        out_shape=jax.ShapeDtypeStruct((R, Lc), img.dtype),
        grid=grid,
        in_specs=[
            pl.BlockSpec(param_block(block_rows, block_cols), param_map),           # mean
            pl.BlockSpec(param_block(block_rows, block_cols), param_map),           # 1/std
            pl.BlockSpec((block_rows, block_cols), lambda i, j: (i, j)),            # img tile
        ],
        out_specs=pl.BlockSpec((block_rows, block_cols), lambda i, j: (i, j)),
        compiler_params=pltpu.CompilerParams(
            dimension_semantics=("parallel", "parallel"),
        ),
    )(mean_arr, istd_arr, x2d)

    return out2d.reshape(N, C, H, W)


if __name__ == "__main__":
    key = jax.random.PRNGKey(0)

    N, C, H, W = 2, 4, 16, 16
    img = jax.random.uniform(key, (N, C, H, W), dtype=jnp.float32)

    # Deterministic parameters (module __init__ takes mean/std lists of length C).
    mean = jnp.array([0.485, 0.456, 0.406, 0.450], dtype=jnp.float32)
    std = jnp.array([0.229, 0.224, 0.225, 0.230], dtype=jnp.float32)

    out = normalization_forward(img, mean, std)
    jax.block_until_ready(out)

    # Reference check against the PyTorch module's semantics.
    # (rtol slightly loosened: kernel uses reciprocal-multiply instead of divide.)
    ref = (img - mean.reshape(-1, 1, 1)) / std.reshape(-1, 1, 1)
    assert out.shape == img.shape and out.dtype == img.dtype
    assert jnp.allclose(out, ref, atol=1e-6, rtol=1e-5)

    print("KERNEL_OK")
</pallas_src>

<mosaic_0001>
module attributes {stable_mosaic.version = 11 : i64} {
  func.func @_normalization_kernel(%arg0: i32, %arg1: i32, %arg2: memref<8x1xf32, #tpu.memory_space<vmem>>, %arg3: memref<8x1xf32, #tpu.memory_space<vmem>>, %arg4: memref<8x256xf32, #tpu.memory_space<vmem>>, %arg5: memref<8x256xf32, #tpu.memory_space<vmem>>) attributes {dimension_semantics = [#tpu.dimension_semantics<parallel>, #tpu.dimension_semantics<parallel>], iteration_bounds = array<i64: 1, 1>, scalar_prefetch = 0 : i64, scratch_operands = 0 : i64, tpu.core_type = #tpu.core_type<tc>, window_params = [{transform_indices = @transform_0, window_bounds = array<i64: 8, 1>}, {transform_indices = @transform_1, window_bounds = array<i64: 8, 1>}, {transform_indices = @transform_2, window_bounds = array<i64: 8, 256>}, {transform_indices = @transform_3, window_bounds = array<i64: 8, 256>}]} {
    %c0 = arith.constant 0 : index
    %c0_0 = arith.constant 0 : index
    %0 = vector.load %arg4[%c0, %c0_0] : memref<8x256xf32, #tpu.memory_space<vmem>>, vector<8x256xf32>
    %c0_1 = arith.constant 0 : index
    %c0_2 = arith.constant 0 : index
    %1 = vector.load %arg2[%c0_1, %c0_2] : memref<8x1xf32, #tpu.memory_space<vmem>>, vector<8x1xf32>
    %2 = vector.broadcast %1 : vector<8x1xf32> to vector<8x256xf32>
    %3 = arith.subf %0, %2 : vector<8x256xf32>
    %c0_3 = arith.constant 0 : index
    %c0_4 = arith.constant 0 : index
    %4 = vector.load %arg3[%c0_3, %c0_4] : memref<8x1xf32, #tpu.memory_space<vmem>>, vector<8x1xf32>
    %5 = vector.broadcast %4 : vector<8x1xf32> to vector<8x256xf32>
    %6 = arith.mulf %3, %5 : vector<8x256xf32>
    %c0_5 = arith.constant 0 : index
    %c0_6 = arith.constant 0 : index
    %7 = vector.load %arg5[%c0_5, %c0_6] : memref<8x256xf32, #tpu.memory_space<vmem>>, vector<8x256xf32>
    tpu.vector_store %arg5[%c0_5, %c0_6], %6 {strides = array<i32>} : memref<8x256xf32, #tpu.memory_space<vmem>>, vector<8x256xf32>,
    return
  }
  func.func @transform_0(%arg0: i32, %arg1: i32) -> (i32, i32) {
    %c0_i32 = arith.constant 0 : i32
    %c0_i32_0 = arith.constant 0 : i32
    return %arg0, %c0_i32 : i32, i32
  }
  func.func @transform_1(%arg0: i32, %arg1: i32) -> (i32, i32) {
    %c0_i32 = arith.constant 0 : i32
    %c0_i32_0 = arith.constant 0 : i32
    return %arg0, %c0_i32 : i32, i32
  }
  func.func @transform_2(%arg0: i32, %arg1: i32) -> (i32, i32) {
    %c0_i32 = arith.constant 0 : i32
    return %arg0, %arg1 : i32, i32
  }
  func.func @transform_3(%arg0: i32, %arg1: i32) -> (i32, i32) {
    %c0_i32 = arith.constant 0 : i32
    return %arg0, %arg1 : i32, i32
  }
}

</mosaic_0001>

<llo_original>
// kernel: tpu_custom_call.1
$region0: #{tpu_custom_call.1}
  #allocation0 [shape = 'u32[]', space=smem, size = 0x4, offset = 0x4, fixed_abs, tag = 'smem constant byte address 0x4 - core index']
  #allocation1 [shape = 'u32[144,128]{1,0:T(1,128)}', space=vmem, size = 0x12000, scoped, tag = 'internal scratch']
  %s0 = inlined_call_operand.vmem [shape: f32[8,1], index: 0, kind: input, shape index: {}]
  %s1 = inlined_call_operand.vmem [shape: f32[8,1], index: 1, kind: input, shape index: {}]
  %s2 = inlined_call_operand.vmem [shape: f32[8,256], index: 2, kind: input, shape index: {}]
  %s3 = inlined_call_operand.hbm [shape: f32[8,256], index: 3, kind: output, shape index: {}]
  %s4 = sld [smem:[#allocation0]]
  $region22: #{tpu_custom_call.1} parent=0
    _
  %s6 = ssub.s32 1, %s4
  %s7 = scalar_select 0, %s6, %s4
  $region1: #{tpu_custom_call.1} parent=0
    #allocation2 [shape = 'u8[8192]{0}', space=vmem, size = 0x2000, scoped, tag = 'output window, operand 0, single buffered']
    #allocation3 [shape = 's32[1]{0}', space=sflag, size = 0x4, scoped, tag = 'scoped memory for tpu_custom_call.1']
    %8 = vsyncpa [#allocation3], 0
    // Predicated region
    $region2: #{tpu_custom_call.1} parent=1 // pred_check
      _
    $region3: #{tpu_custom_call.1} parent=1 // pred_check_branch
      %10 = sbr.rel (0) target = $region5
    $region4: #{tpu_custom_call.1} parent=1 // pred_region
      _
    $region5: #{tpu_custom_call.1} parent=1 // pred_fallthru
      _
    // Predicated region
    $region6: #{tpu_custom_call.1} parent=1 // pred_check
      _
    $region7: #{tpu_custom_call.1} parent=1 // pred_check_branch
      %12 = sbr.rel (0) target = $region9
    $region8: #{tpu_custom_call.1} parent=1 // pred_region
      _
    $region9: #{tpu_custom_call.1} parent=1 // pred_fallthru
      _
    // Predicated region
    $region10: #{tpu_custom_call.1} parent=1 // pred_check
      _
    $region11: #{tpu_custom_call.1} parent=1 // pred_check_branch
      %14 = sbr.rel (0) target = $region13
    $region12: #{tpu_custom_call.1} parent=1 // pred_region
      _
    $region13: #{tpu_custom_call.1} parent=1 // pred_fallthru
      _
    %v15 = vld [vmem:[%s2] sm:$0xff]
    %v16 = vld [vmem:[%s2 + $0x8] sm:$0xff]
    %v17 = vld [vmem:[%s0] sm:$0xff]
    %19 = vset.pattern.permute.xlu0 0
    %20 = vperm.xlu0 %19, %v17
    %v21 = vpop.permute.xlu0 %20
    %v23 = vsub.f32 %v15, %v21
    %v24 = vsub.f32 %v16, %v21
    %v25 = vld [vmem:[%s1] sm:$0xff]
    %27 = vset.pattern.permute.xlu0 0
    %28 = vperm.xlu0 %27, %v25
    %v29 = vpop.permute.xlu0 %28
    %v31 = vmul.f32 %v23, %v29
    %v32 = vmul.f32 %v24, %v29
    %33 = vst [vmem:[#allocation2] sm:$0xff] %v31
    %34 = vst [vmem:[#allocation2 + $0x8] sm:$0xff] %v32
    // Predicated region
    $region14: #{tpu_custom_call.1} parent=1 // pred_check
      _
    $region15: #{tpu_custom_call.1} parent=1 // pred_check_branch
      %36 = sbr.rel (0) target = $region17
    $region16: #{tpu_custom_call.1} parent=1 // pred_region
      %s38 = ssub.s32 256, 256
      %39 = vsyncadd [#allocation3], %s38
      %s41 = sshll.u32 [#allocation2], 4
      %s42 = int_to_ptr.vmem [resolvable:$true] %s41
      %44 = dma.vmem_to_hbm [thread:$0]  %s42, 256, %s3, [#allocation3]
    $region17: #{tpu_custom_call.1} parent=1 // pred_fallthru
      _
    // Predicated region
    $region18: #{tpu_custom_call.1} parent=1 // pred_check
      _
    $region19: #{tpu_custom_call.1} parent=1 // pred_check_branch
      %46 = sbr.rel (0) target = $region21
    $region20: #{tpu_custom_call.1} parent=1 // pred_region
      %47 = dma.done [#allocation3], 256
    $region21: #{tpu_custom_call.1} parent=1 // pred_fallthru
      _
    %48 = vsyncpa [#allocation3], 1

</llo_original>
